<compile_context>
chip_gen: v6e
topology: v6e:2x2x1
jax: 0.10.0
libtpu: 0.0.40
codegen_flags: <defaults>
</compile_context>

<pallas_src>
import functools

import jax
import jax.numpy as jnp
from jax.experimental import pallas as pl
from jax.experimental.pallas import tpu as pltpu


def _round_up(x, m):
    return (x + m - 1) // m * m


# --------------------------------------------------------------------------------------
# Pallas kernels
# --------------------------------------------------------------------------------------
def _conv_matmul_kernel(p_ref, w_ref, o_ref):
    # p_ref: (TILE_M, K) im2col patch rows; w_ref: (K, Cout) unfolded conv weight.
    # DEFAULT matmul precision (review feedback), f32 accumulation on the MXU.
    o_ref[...] = jnp.dot(p_ref[...], w_ref[...],
                         preferred_element_type=jnp.float32).astype(o_ref.dtype)


def _maxpool_kernel(planes_ref, o_ref, *, taps, out_h, out_w):
    # planes_ref: (PP, Hpl, Wpl, C) stride-parity planes of one padded feature map.
    # taps: static tuple of (plane_index, row_offset, col_offset), one per pooling tap.
    p0, ra0, ca0 = taps[0]
    acc = planes_ref[p0, ra0:ra0 + out_h, ca0:ca0 + out_w, :]
    for (p, ra, ca) in taps[1:]:
        acc = jnp.maximum(acc, planes_ref[p, ra:ra + out_h, ca:ca + out_w, :])
    o_ref[0] = acc


# --------------------------------------------------------------------------------------
# Wrappers (glue = padding / im2col / parity split / reshape; compute = Pallas)
# --------------------------------------------------------------------------------------
def conv2d_pallas(x_nhwc, weight_oihw, stride, padding, *, tile_m=256):
    """Conv2d (bias=False) via im2col + tiled Pallas MXU matmul. x_nhwc: (N,H,W,Cin)."""
    N, H, W, Cin = x_nhwc.shape
    Cout, Cin_w, KH, KW = weight_oihw.shape
    assert Cin == Cin_w
    Ho = (H + 2 * padding - KH) // stride + 1
    Wo = (W + 2 * padding - KW) // stride + 1
    xp = jnp.pad(x_nhwc, ((0, 0), (padding, padding), (padding, padding), (0, 0)))

    # im2col (layout glue): per-tap strided views, feature order (dh, dw, cin).
    # TODO(synk): for deep layers (large Cin) move the tap expansion inside the kernel
    # (tap grid axis + accumulator scratch) to avoid KH*KW-fold HBM duplication; for the
    # first layer (Cin=3) im2col with K=KH*KW*Cin gives better MXU contraction depth.
    taps = []
    for dh in range(KH):
        for dw in range(KW):
            taps.append(jax.lax.slice(
                xp,
                (0, dh, dw, 0),
                (N, dh + (Ho - 1) * stride + 1, dw + (Wo - 1) * stride + 1, Cin),
                (1, stride, stride, 1)))
    M = N * Ho * Wo
    K = KH * KW * Cin
    patches = jnp.concatenate(taps, axis=-1).reshape(M, K)
    # (Cout, Cin, KH, KW) -> (KH, KW, Cin, Cout) -> (K, Cout) to match patch ordering
    wm = jnp.transpose(weight_oihw, (2, 3, 1, 0)).reshape(K, Cout)

    # Tile M (review feedback): restores DMA/compute pipelining and bounds VMEM; a
    # "parallel" grid lets v7x's two TensorCores split the work.
    tile_m = min(tile_m, _round_up(M, 8))
    Mp = _round_up(M, tile_m)
    if Mp != M:
        patches = jnp.pad(patches, ((0, Mp - M), (0, 0)))

    out = pl.pallas_call(
        _conv_matmul_kernel,
        out_shape=jax.ShapeDtypeStruct((Mp, Cout), x_nhwc.dtype),
        grid=(Mp // tile_m,),
        in_specs=[pl.BlockSpec((tile_m, K), lambda i: (i, 0)),
                  pl.BlockSpec((K, Cout), lambda i: (0, 0))],
        out_specs=pl.BlockSpec((tile_m, Cout), lambda i: (i, 0)),
        compiler_params=pltpu.CompilerParams(dimension_semantics=("parallel",)),
    )(patches, wm)
    return out[:M].reshape(N, Ho, Wo, Cout)


def maxpool2d_pallas(x_nhwc, kernel_size, stride, padding):
    """MaxPool2d via stride-parity planes + in-kernel shifted maximum. x_nhwc: (N,H,W,C).

    The KH*KW pooling taps are never materialized in HBM: the padded map is split into
    stride*stride parity planes (same total bytes as the input) and the kernel reduces
    unit-stride shifted slices of those planes in VMEM, one image per grid step.
    """
    N, H, W, C = x_nhwc.shape
    Ho = (H + 2 * padding - kernel_size) // stride + 1
    Wo = (W + 2 * padding - kernel_size) // stride + 1
    xp = jnp.pad(x_nhwc, ((0, 0), (padding, padding), (padding, padding), (0, 0)),
                 constant_values=-jnp.inf)
    Hp, Wp = H + 2 * padding, W + 2 * padding

    ps = stride
    PP = ps * ps
    Hpl = -(-Hp // ps)  # ceil
    Wpl = -(-Wp // ps)
    planes = []
    for ra in range(ps):
        for rb in range(ps):
            plane = xp[:, ra::ps, rb::ps, :]
            ph, pw = plane.shape[1], plane.shape[2]
            if (ph, pw) != (Hpl, Wpl):
                # pad to a common plane shape; padded rows/cols are never read
                plane = jnp.pad(plane,
                                ((0, 0), (0, Hpl - ph), (0, Wpl - pw), (0, 0)),
                                constant_values=-jnp.inf)
            planes.append(plane)
    planes = jnp.stack(planes, axis=1).reshape(N * PP, Hpl, Wpl, C)

    # static tap -> (plane index, row offset, col offset):
    #   xp[ps*i + a, ps*j + b] == plane[(a%ps)*ps + (b%ps)][i + a//ps, j + b//ps]
    taps = tuple(((a % ps) * ps + (b % ps), a // ps, b // ps)
                 for a in range(kernel_size) for b in range(kernel_size))

    kernel = functools.partial(_maxpool_kernel, taps=taps, out_h=Ho, out_w=Wo)
    out = pl.pallas_call(
        kernel,
        out_shape=jax.ShapeDtypeStruct((N, Ho, Wo, C), x_nhwc.dtype),
        grid=(N,),
        in_specs=[pl.BlockSpec((PP, Hpl, Wpl, C), lambda n: (n, 0, 0, 0))],
        out_specs=pl.BlockSpec((1, Ho, Wo, C), lambda n: (n, 0, 0, 0)),
        compiler_params=pltpu.CompilerParams(dimension_semantics=("parallel",)),
    )(planes)
    return out


# --------------------------------------------------------------------------------------
# Tokenizer module (JAX/Pallas)
# --------------------------------------------------------------------------------------
class TokenizerPallas:
    def __init__(self, kernel_size, stride, padding,
                 pooling_kernel_size=3, pooling_stride=2, pooling_padding=1,
                 n_conv_layers=1, n_input_channels=3, n_output_channels=64,
                 in_planes=64, activation=None, max_pool=True, conv_bias=False,
                 key=jax.random.PRNGKey(0)):
        assert activation is None and not conv_bias  # matches module defaults
        n_filter_list = ([n_input_channels]
                         + [in_planes for _ in range(n_conv_layers - 1)]
                         + [n_output_channels])
        self.kernel_size, self.stride, self.padding = kernel_size, stride, padding
        self.pk, self.ps, self.pp = pooling_kernel_size, pooling_stride, pooling_padding
        self.max_pool = max_pool

        keys = jax.random.split(key, n_conv_layers)
        self.weights = []
        for i in range(n_conv_layers):
            cin, cout = n_filter_list[i], n_filter_list[i + 1]
            fan_in = cin * kernel_size * kernel_size
            std = (2.0 / fan_in) ** 0.5   # kaiming_normal_ (fan_in mode, relu gain)
            w = std * jax.random.normal(keys[i], (cout, cin, kernel_size, kernel_size),
                                        dtype=jnp.float32)
            self.weights.append(w)

    def __call__(self, x_nchw):
        x = jnp.transpose(x_nchw, (0, 2, 3, 1))            # NCHW -> NHWC
        for w in self.weights:
            x = conv2d_pallas(x, w, self.stride, self.padding)
            # activation is None -> Identity
            if self.max_pool:
                x = maxpool2d_pallas(x, self.pk, self.ps, self.pp)
        N, H, W, C = x.shape
        # == Flatten(2,3) then transpose(-2,-1) in the NCHW reference
        return x.reshape(N, H * W, C)

    def sequence_length(self, n_channels=3, height=224, width=224):
        return self(jnp.zeros((1, n_channels, height, width), jnp.float32)).shape[1]


# --------------------------------------------------------------------------------------
# Reference (pure JAX) for verification
# --------------------------------------------------------------------------------------
def reference_forward(x_nchw, weights, stride, padding, pk, ps, pp, max_pool):
    y = x_nchw
    for w in weights:
        y = jax.lax.conv_general_dilated(
            y, w, window_strides=(stride, stride),
            padding=((padding, padding), (padding, padding)),
            dimension_numbers=('NCHW', 'OIHW', 'NCHW'),
            precision=jax.lax.Precision.HIGHEST)
        if max_pool:
            y = jax.lax.reduce_window(
                y, -jnp.inf, jax.lax.max,
                window_dimensions=(1, 1, pk, pk),
                window_strides=(1, 1, ps, ps),
                padding=((0, 0), (0, 0), (pp, pp), (pp, pp)))
    N, C, H, W = y.shape
    return jnp.transpose(y.reshape(N, C, H * W), (0, 2, 1))


if __name__ == "__main__":
    key = jax.random.PRNGKey(0)
    k_w, k_x = jax.random.split(key)

    # small shapes: batch=2, channels=3, spatial=16x16, n_output_channels=32
    tok = TokenizerPallas(kernel_size=3, stride=1, padding=1,
                          n_conv_layers=1, n_input_channels=3,
                          n_output_channels=32, in_planes=32,
                          max_pool=True, key=k_w)

    x = jax.random.normal(k_x, (2, 3, 16, 16), dtype=jnp.float32)

    out = jax.block_until_ready(tok(x))
    ref = jax.block_until_ready(
        reference_forward(x, tok.weights, tok.stride, tok.padding,
                          tok.pk, tok.ps, tok.pp, tok.max_pool))

    assert out.shape == (2, 8 * 8, 32), out.shape
    # DEFAULT MXU precision in the kernel vs f32-HIGHEST reference -> relaxed tolerance
    max_err = float(jnp.max(jnp.abs(out - ref)))
    assert jnp.allclose(out, ref, rtol=5e-2, atol=5e-2), max_err
    print("KERNEL_OK")
</pallas_src>

<mosaic_0001>
module attributes {stable_mosaic.version = 11 : i64} {
  func.func @_conv_matmul_kernel(%arg0: i32, %arg1: memref<256x27xf32, #tpu.memory_space<vmem>>, %arg2: memref<27x32xf32, #tpu.memory_space<vmem>>, %arg3: memref<256x32xf32, #tpu.memory_space<vmem>>) attributes {dimension_semantics = [#tpu.dimension_semantics<parallel>], iteration_bounds = array<i64: 2>, scalar_prefetch = 0 : i64, scratch_operands = 0 : i64, tpu.core_type = #tpu.core_type<tc>, window_params = [{transform_indices = @transform_0, window_bounds = array<i64: 256, 27>}, {pipeline_mode = #tpu.pipeline_mode<synchronous>, transform_indices = @transform_1, window_bounds = array<i64: 27, 32>}, {transform_indices = @transform_2, window_bounds = array<i64: 256, 32>}]} {
    %c0 = arith.constant 0 : index
    %c0_0 = arith.constant 0 : index
    %0 = vector.load %arg1[%c0, %c0_0] : memref<256x27xf32, #tpu.memory_space<vmem>>, vector<256x27xf32>
    %c0_1 = arith.constant 0 : index
    %c0_2 = arith.constant 0 : index
    %1 = vector.load %arg2[%c0_1, %c0_2] : memref<27x32xf32, #tpu.memory_space<vmem>>, vector<27x32xf32>
    %cst = arith.constant dense<0.000000e+00> : vector<256x32xf32>
    %2 = tpu.matmul %0, %1, %cst {dimension_numbers = #tpu.dot_dimension_numbers<[1], [0], [0], [1], [0, 0, 1, 1], [], []>} : vector<256x27xf32>, vector<27x32xf32>, vector<256x32xf32> -> vector<256x32xf32>
    %c0_3 = arith.constant 0 : index
    %c0_4 = arith.constant 0 : index
    %3 = vector.load %arg3[%c0_3, %c0_4] : memref<256x32xf32, #tpu.memory_space<vmem>>, vector<256x32xf32>
    tpu.vector_store %arg3[%c0_3, %c0_4], %2 {strides = array<i32>} : memref<256x32xf32, #tpu.memory_space<vmem>>, vector<256x32xf32>,
    return
  }
  func.func @transform_0(%arg0: i32) -> (i32, i32) {
    %c0_i32 = arith.constant 0 : i32
    %c0_i32_0 = arith.constant 0 : i32
    return %arg0, %c0_i32 : i32, i32
  }
  func.func @transform_1(%arg0: i32) -> (i32, i32) {
    %c0_i32 = arith.constant 0 : i32
    %c0_i32_0 = arith.constant 0 : i32
    %c0_i32_1 = arith.constant 0 : i32
    return %c0_i32, %c0_i32_0 : i32, i32
  }
  func.func @transform_2(%arg0: i32) -> (i32, i32) {
    %c0_i32 = arith.constant 0 : i32
    %c0_i32_0 = arith.constant 0 : i32
    return %arg0, %c0_i32 : i32, i32
  }
}

</mosaic_0001>

<llo_original>
// kernel: tpu_custom_call.1
$region0: #{tpu_custom_call.1}
  #allocation0 [shape = 'u32[]', space=smem, size = 0x4, offset = 0x4, fixed_abs, tag = 'smem constant byte address 0x4 - core index']
  #allocation1 [shape = 'u32[144,128]{1,0:T(1,128)}', space=vmem, size = 0x12000, scoped, tag = 'internal scratch']
  %s0 = inlined_call_operand.vmem [shape: f32[512,27], index: 0, kind: input, shape index: {}]
  %s1 = inlined_call_operand.vmem [shape: f32[27,32], index: 1, kind: input, shape index: {}]
  %s2 = inlined_call_operand.vmem [shape: f32[512,32], index: 2, kind: output, shape index: {}]
  %s3 = sld [smem:[#allocation0]]
  $region41: #{tpu_custom_call.1} parent=0
    _
  %s5 = ssub.s32 1, %s3
  %s6 = scalar_select 0, %s5, %s3
  loop: start=0, step=1, limit=4
  $region2: #{tpu_custom_call.1} parent=0 // loop_pre_header
    _
  $region3: #{tpu_custom_call.1} parent=0 // loop_header
    %s8 = sphi 0, %s12
    %p9 = scmp.ge.s32.totalorder %s8, 4
    %s18 = sphi 0, %s20
    %s21 = sphi 0, %s18
    %s22 = sphi 0, %s21
    %s38 = sphi 0, %s22
    %s42 = sphi 0, %s42
    %s44 = sphi 0, %s42
    %s45 = sphi 0, %s44
    %s59 = sphi 0, %s45
    %s65 = sphi 0, %s67
    %s68 = sphi 0, %s65
    %s69 = sphi 0, %s68
    %s85 = sphi 0, %s69
  $region4: #{tpu_custom_call.1} parent=0 // loop_header_branch
    %11 = sbr.rel (%p9) target = $region8
  $region5: #{tpu_custom_call.1} parent=0 // loop_body
    %s13 = ssub.s32 %s8, 1
    %s14 = ssub.s32 %s8, 2
    %s15 = sadd.s32 %s8, 1
    %s16 = ssub.s32 %s8, %s15
    %p17 = scmp.eq.s32.totalorder %s16, 0
    %s19 = sadd.s32 %s18, 1
    %s20 = scalar_select %p17, %s18, %s19
    %p23 = pneg %p17
    %p24 = scmp.eq.s32.totalorder %s8, 1
    %p25 = por %p23, %p24
    %p26 = scmp.ne.s32.totalorder %s18, %s21
    %p27 = scmp.eq.s32.totalorder %s8, 0
    %p28 = por %p26, %p27
    %p29 = scmp.ne.s32.totalorder %s18, %s21
    %p30 = scmp.eq.s32.totalorder %s13, 1
    %p31 = por %p29, %p30
    %p32 = scmp.ne.s32.totalorder %s21, %s22
    %p33 = scmp.eq.s32.totalorder %s13, 0
    %p34 = por %p32, %p33
    %p35 = scmp.ne.s32.totalorder %s21, %s22
    %p36 = scmp.eq.s32.totalorder %s14, 1
    %p37 = por %p35, %p36
    %p39 = scmp.ne.s32.totalorder %s22, %s38
    %p40 = scmp.eq.s32.totalorder %s14, 0
    %p41 = por %p39, %p40
    %s43 = sadd.s32 %s42, 1
    %p46 = scmp.eq.s32.totalorder %s8, 1
    %p47 = scmp.ne.s32.totalorder %s42, %s44
    %p48 = scmp.eq.s32.totalorder %s8, 0
    %p49 = por %p47, %p48
    %p50 = scmp.ne.s32.totalorder %s42, %s44
    %p51 = scmp.eq.s32.totalorder %s13, 1
    %p52 = por %p50, %p51
    %p53 = scmp.ne.s32.totalorder %s44, %s45
    %p54 = scmp.eq.s32.totalorder %s13, 0
    %p55 = por %p53, %p54
    %p56 = scmp.ne.s32.totalorder %s44, %s45
    %p57 = scmp.eq.s32.totalorder %s14, 1
    %p58 = por %p56, %p57
    %p60 = scmp.ne.s32.totalorder %s45, %s59
    %p61 = scmp.eq.s32.totalorder %s14, 0
    %p62 = por %p60, %p61
    %s63 = ssub.s32 %s8, %s15
    %p64 = scmp.eq.s32.totalorder %s63, 0
    %s66 = sadd.s32 %s65, 1
    %s67 = scalar_select %p64, %s65, %s66
    %p70 = pneg %p64
    %p71 = scmp.eq.s32.totalorder %s8, 1
    %p72 = por %p70, %p71
    %p73 = scmp.ne.s32.totalorder %s65, %s68
    %p74 = scmp.eq.s32.totalorder %s8, 0
    %p75 = por %p73, %p74
    %p76 = scmp.ne.s32.totalorder %s65, %s68
    %p77 = scmp.eq.s32.totalorder %s13, 1
    %p78 = por %p76, %p77
    %p79 = scmp.ne.s32.totalorder %s68, %s69
    %p80 = scmp.eq.s32.totalorder %s13, 0
    %p81 = por %p79, %p80
    %p82 = scmp.ne.s32.totalorder %s68, %s69
    %p83 = scmp.eq.s32.totalorder %s14, 1
    %p84 = por %p82, %p83
    %p86 = scmp.ne.s32.totalorder %s69, %s85
    %p87 = scmp.eq.s32.totalorder %s14, 0
    %p88 = por %p86, %p87
    %p89 = scmp.le.s32.totalorder 1, %s8
    %p90 = scmp.lt.s32.totalorder %s8, 3
    %p91 = pnand %p89, %p90
    %p92 = pneg %p91
    // Predicated region
    $region9: #{tpu_custom_call.1} parent=5 // pred_check
      _
    $region10: #{tpu_custom_call.1} parent=5 // pred_check_branch
      %94 = sbr.rel (%p91) target = $region12
    $region11: #{tpu_custom_call.1} parent=5 // pred_region
      %s95 = ssub.s32 %s8, 1
      // Predicated region
      $region13: #{tpu_custom_call.1} parent=11 // pred_check
        %p96 = pneg %p55
      $region14: #{tpu_custom_call.1} parent=11 // pred_check_branch
        %98 = sbr.rel (%p96) target = $region16
      $region15: #{tpu_custom_call.1} parent=11 // pred_region
        _
      $region16: #{tpu_custom_call.1} parent=11 // pred_fallthru
        _
    $region12: #{tpu_custom_call.1} parent=5 // pred_fallthru
      _
    %p99 = scmp.lt.s32.totalorder %s8, 2
    // Predicated region
    $region17: #{tpu_custom_call.1} parent=5 // pred_check
      %p100 = pneg %p99
    $region18: #{tpu_custom_call.1} parent=5 // pred_check_branch
      %102 = sbr.rel (%p100) target = $region20
    $region19: #{tpu_custom_call.1} parent=5 // pred_region
      // Predicated region
      $region21: #{tpu_custom_call.1} parent=19 // pred_check
        %p103 = pneg %p28
      $region22: #{tpu_custom_call.1} parent=19 // pred_check_branch
        %105 = sbr.rel (%p103) target = $region24
      $region23: #{tpu_custom_call.1} parent=19 // pred_region
        %s106 = smul.u32 32, %s8
        %p107 = scmp.lt.s32.totalorder %s106, 63
        %s108 = scalar_select %p107, %s106, 63
        %s109 = smul.addr %s108, 8
        %s110 = scalar_lea.vmem %s0, %s109
        %s111 = smul.u32 32, %s8
      $region24: #{tpu_custom_call.1} parent=19 // pred_fallthru
        _
    $region20: #{tpu_custom_call.1} parent=5 // pred_fallthru
      _
    %p112 = scmp.le.s32.totalorder 1, %s8
    %p113 = scmp.lt.s32.totalorder %s8, 3
    %p114 = pnand %p112, %p113
    %p115 = pneg %p114
    // Predicated region
    $region25: #{tpu_custom_call.1} parent=5 // pred_check
      _
    $region26: #{tpu_custom_call.1} parent=5 // pred_check_branch
      %117 = sbr.rel (%p114) target = $region28
    $region27: #{tpu_custom_call.1} parent=5 // pred_region
      %s118 = ssub.s32 %s8, 1
      %s119 = smul.u32 32, %s13
      %p120 = scmp.lt.s32.totalorder %s119, 63
      %s121 = scalar_select %p120, %s119, 63
      %s122 = smul.addr %s121, 8
      %s123 = scalar_lea.vmem %s0, %s122
      %p124 = pneg %p34
      %p125 = pneg %p31
      %p126 = pneg %p55
      %p127 = pneg %p52
      %p128 = pneg %p81
      %p129 = pneg %p78
      %s130 = smul.u32 32, %s13
      %p131 = scmp.lt.s32.totalorder %s130, 63
      %s132 = scalar_select %p131, %s130, 63
      %s133 = smul.addr %s132, 8
      %s134 = scalar_lea.vmem %s2, %s133
      %s135 = smul.u32 32, %s13
      %p136 = scmp.lt.s32.totalorder %s135, 63
      %s137 = scalar_select %p136, %s135, 63
      %s138 = smul.addr %s137, 8
      %s139 = scalar_lea.vmem %s0, %s138
      %s140 = smul.u32 32, %s13
      %s141 = smul.u32 32, %s13
      %p142 = scmp.lt.s32.totalorder %s141, 63
      %s143 = scalar_select %p142, %s141, 63
      %s144 = smul.addr %s143, 8
      %s145 = scalar_lea.vmem %s2, %s144
      %s146 = smul.u32 32, %s13
      %v147 = vld [vmem:[%s139] sm:$0xff]
      %v148 = vld [vmem:[%s139 + $0x8] sm:$0xff]
      %v149 = vld [vmem:[%s139 + $0x10] sm:$0xff]
      %v150 = vld [vmem:[%s139 + $0x18] sm:$0xff]
      %v151 = vld [vmem:[%s139 + $0x20] sm:$0xff]
      %v152 = vld [vmem:[%s139 + $0x28] sm:$0xff]
      %v153 = vld [vmem:[%s139 + $0x30] sm:$0xff]
      %v154 = vld [vmem:[%s139 + $0x38] sm:$0xff]
      %v155 = vld [vmem:[%s139 + $0x40] sm:$0xff]
      %v156 = vld [vmem:[%s139 + $0x48] sm:$0xff]
      %v157 = vld [vmem:[%s139 + $0x50] sm:$0xff]
      %v158 = vld [vmem:[%s139 + $0x58] sm:$0xff]
      %v159 = vld [vmem:[%s139 + $0x60] sm:$0xff]
      %v160 = vld [vmem:[%s139 + $0x68] sm:$0xff]
      %v161 = vld [vmem:[%s139 + $0x70] sm:$0xff]
      %v162 = vld [vmem:[%s139 + $0x78] sm:$0xff]
      %v163 = vld [vmem:[%s139 + $0x80] sm:$0xff]
      %v164 = vld [vmem:[%s139 + $0x88] sm:$0xff]
      %v165 = vld [vmem:[%s139 + $0x90] sm:$0xff]
      %v166 = vld [vmem:[%s139 + $0x98] sm:$0xff]
      %v167 = vld [vmem:[%s139 + $0xa0] sm:$0xff]
      %v168 = vld [vmem:[%s139 + $0xa8] sm:$0xff]
      %v169 = vld [vmem:[%s139 + $0xb0] sm:$0xff]
      %v170 = vld [vmem:[%s139 + $0xb8] sm:$0xff]
      %v171 = vld [vmem:[%s139 + $0xc0] sm:$0xff]
      %v172 = vld [vmem:[%s139 + $0xc8] sm:$0xff]
      %v173 = vld [vmem:[%s139 + $0xd0] sm:$0xff]
      %v174 = vld [vmem:[%s139 + $0xd8] sm:$0xff]
      %v175 = vld [vmem:[%s139 + $0xe0] sm:$0xff]
      %v176 = vld [vmem:[%s139 + $0xe8] sm:$0xff]
      %v177 = vld [vmem:[%s139 + $0xf0] sm:$0xff]
      %v178 = vld [vmem:[%s139 + $0xf8] sm:$0xff]
      %v179 = vld [vmem:[%s1] sm:$0xff]
      %v180 = vld [vmem:[%s1 + $0x8] sm:$0xff]
      %v181 = vld [vmem:[%s1 + $0x10] sm:$0xff]
      %v182 = vld [vmem:[%s1 + $0x18] sm:$0x7]
      %vm183 = vcmask 220160
      %v185 = vsel %vm183, %v147, 0
      %v188 = vsel %vm183, %v148, 0
      %v191 = vsel %vm183, %v149, 0
      %v194 = vsel %vm183, %v150, 0
      %v197 = vsel %vm183, %v151, 0
      %v200 = vsel %vm183, %v152, 0
      %v203 = vsel %vm183, %v153, 0
      %v206 = vsel %vm183, %v154, 0
      %v209 = vsel %vm183, %v155, 0
      %v212 = vsel %vm183, %v156, 0
      %v215 = vsel %vm183, %v157, 0
      %v218 = vsel %vm183, %v158, 0
      %v221 = vsel %vm183, %v159, 0
      %v224 = vsel %vm183, %v160, 0
      %v227 = vsel %vm183, %v161, 0
      %v230 = vsel %vm183, %v162, 0
      %v233 = vsel %vm183, %v163, 0
      %v236 = vsel %vm183, %v164, 0
      %v239 = vsel %vm183, %v165, 0
      %v242 = vsel %vm183, %v166, 0
      %v245 = vsel %vm183, %v167, 0
      %v248 = vsel %vm183, %v168, 0
      %v251 = vsel %vm183, %v169, 0
      %v254 = vsel %vm183, %v170, 0
      %v257 = vsel %vm183, %v171, 0
      %v260 = vsel %vm183, %v172, 0
      %v263 = vsel %vm183, %v173, 0
      %v266 = vsel %vm183, %v174, 0
      %v269 = vsel %vm183, %v175, 0
      %v272 = vsel %vm183, %v176, 0
      %v275 = vsel %vm183, %v177, 0
      %v278 = vsel %vm183, %v178, 0
      %vm280 = vcmask 1042432
      %v282 = vsel %vm280, %v182, 0
      %284 = vmatprep.subr.mxu0 0.0
      %285 = vmatpush1.msra.mxu0 0.0
      %286 = vmatprep.subr.mxu0 0.0
      %287 = vmatpush1.msra.mxu0 0.0
      %288 = vmatprep.subr.mxu0 0.0
      %289 = vmatpush1.msra.mxu0 0.0
      %290 = vmatprep.subr.mxu0 0.0
      %291 = vmatpush1.msra.mxu0 0.0
      %292 = vmatprep.subr.mxu0 0.0
      %293 = vmatpush1.msra.mxu0 0.0
      %294 = vmatprep.subr.mxu0 0.0
      %295 = vmatpush1.msra.mxu0 0.0
      %296 = vmatprep.subr.mxu0 0.0
      %297 = vmatpush1.msra.mxu0 0.0
      %298 = vmatprep.subr.mxu0 0.0
      %299 = vmatpush1.msra.mxu0 0.0
      %300 = vmatprep.subr.mxu0 0.0
      %301 = vmatpush1.msra.mxu0 0.0
      %302 = vmatprep.subr.mxu0 0.0
      %303 = vmatpush1.msra.mxu0 0.0
      %304 = vmatprep.subr.mxu0 0.0
      %305 = vmatpush1.msra.mxu0 0.0
      %306 = vmatprep.subr.mxu0 0.0
      %307 = vmatpush1.msra.mxu0 0.0
      %308 = vmatprep.subr.mxu0 0.0
      %309 = vmatpush1.msra.mxu0 %v282
      %310 = vmatprep.subr.mxu0 0.0
      %311 = vmatpush1.msra.mxu0 %v181
      %312 = vmatprep.subr.mxu0 0.0
      %313 = vmatpush1.msra.mxu0 %v180
      %314 = vmatprep.subr.mxu0 0.0
      %315 = vmatpush1.msra.mxu0 %v179
      %316 = vmatprep.subr.mxu0 0.0
      %317 = vmatpush2.msra.mxu0 0.0
      %318 = vmatprep.subr.mxu0 0.0
      %319 = vmatpush2.msra.mxu0 0.0
      %320 = vmatprep.subr.mxu0 0.0
      %321 = vmatpush2.msra.mxu0 0.0
      %322 = vmatprep.subr.mxu0 0.0
      %323 = vmatpush2.msra.mxu0 0.0
      %324 = vmatprep.subr.mxu0 0.0
      %325 = vmatpush2.msra.mxu0 0.0
      %326 = vmatprep.subr.mxu0 0.0
      %327 = vmatpush2.msra.mxu0 0.0
      %328 = vmatprep.subr.mxu0 0.0
      %329 = vmatpush2.msra.mxu0 0.0
      %330 = vmatprep.subr.mxu0 0.0
      %331 = vmatpush2.msra.mxu0 0.0
      %332 = vmatprep.subr.mxu0 0.0
      %333 = vmatpush2.msra.mxu0 0.0
      %334 = vmatprep.subr.mxu0 0.0
      %335 = vmatpush2.msra.mxu0 0.0
      %336 = vmatprep.subr.mxu0 0.0
      %337 = vmatpush2.msra.mxu0 0.0
      %338 = vmatprep.subr.mxu0 0.0
      %339 = vmatpush2.msra.mxu0 0.0
      %340 = vmatprep.subr.mxu0 0.0
      %341 = vmatpush2.msra.mxu0 0.0
      %342 = vmatprep.subr.mxu0 0.0
      %343 = vmatpush2.msra.mxu0 0.0
      %344 = vmatprep.subr.mxu0 0.0
      %345 = vmatpush2.msra.mxu0 0.0
      %346 = vmatprep.subr.mxu0 0.0
      %347 = vmatpush2.msra.mxu0 0.0
      %348 = vmatprep.mubr.f32.mxu0 0.0
      %349 = vmatmul.mubr.f32.gmra.mxu0 %v185
      %v350 = vpop.f32.mrf.mxu0
      %v351 = vadd.f32 0.0, %v350
      %v352 = vpop.f32.mrf.mxu0
      %353 = vmatprep.mubr.f32.mxu0 0.0
      %354 = vmatmul.mubr.f32.gmra.mxu0 %v188
      %v355 = vpop.f32.mrf.mxu0
      %v356 = vadd.f32 0.0, %v355
      %v357 = vpop.f32.mrf.mxu0
      %358 = vmatprep.mubr.f32.mxu0 0.0
      %359 = vmatmul.mubr.f32.gmra.mxu0 %v191
      %v360 = vpop.f32.mrf.mxu0
      %v361 = vadd.f32 0.0, %v360
      %v362 = vpop.f32.mrf.mxu0
      %363 = vmatprep.mubr.f32.mxu0 0.0
      %364 = vmatmul.mubr.f32.gmra.mxu0 %v194
      %v365 = vpop.f32.mrf.mxu0
      %v366 = vadd.f32 0.0, %v365
      %v367 = vpop.f32.mrf.mxu0
      %368 = vmatprep.mubr.f32.mxu0 0.0
      %369 = vmatmul.mubr.f32.gmra.mxu0 %v197
      %v370 = vpop.f32.mrf.mxu0
      %v371 = vadd.f32 0.0, %v370
      %v372 = vpop.f32.mrf.mxu0
      %373 = vmatprep.mubr.f32.mxu0 0.0
      %374 = vmatmul.mubr.f32.gmra.mxu0 %v200
      %v375 = vpop.f32.mrf.mxu0
      %v376 = vadd.f32 0.0, %v375
      %v377 = vpop.f32.mrf.mxu0
      %378 = vmatprep.mubr.f32.mxu0 0.0
      %379 = vmatmul.mubr.f32.gmra.mxu0 %v203
      %v380 = vpop.f32.mrf.mxu0
      %v381 = vadd.f32 0.0, %v380
      %v382 = vpop.f32.mrf.mxu0
      %383 = vmatprep.mubr.f32.mxu0 0.0
      %384 = vmatmul.mubr.f32.gmra.mxu0 %v206
      %v385 = vpop.f32.mrf.mxu0
      %v386 = vadd.f32 0.0, %v385
      %v387 = vpop.f32.mrf.mxu0
      %388 = vmatprep.mubr.f32.mxu0 0.0
      %389 = vmatmul.mubr.f32.gmra.mxu0 %v209
      %v390 = vpop.f32.mrf.mxu0
      %v391 = vadd.f32 0.0, %v390
      %v392 = vpop.f32.mrf.mxu0
      %393 = vmatprep.mubr.f32.mxu0 0.0
      %394 = vmatmul.mubr.f32.gmra.mxu0 %v212
      %v395 = vpop.f32.mrf.mxu0
      %v396 = vadd.f32 0.0, %v395
      %v397 = vpop.f32.mrf.mxu0
      %398 = vmatprep.mubr.f32.mxu0 0.0
      %399 = vmatmul.mubr.f32.gmra.mxu0 %v215
      %v400 = vpop.f32.mrf.mxu0
      %v401 = vadd.f32 0.0, %v400
      %v402 = vpop.f32.mrf.mxu0
      %403 = vmatprep.mubr.f32.mxu0 0.0
      %404 = vmatmul.mubr.f32.gmra.mxu0 %v218
      %v405 = vpop.f32.mrf.mxu0
      %v406 = vadd.f32 0.0, %v405
      %v407 = vpop.f32.mrf.mxu0
      %408 = vmatprep.mubr.f32.mxu0 0.0
      %409 = vmatmul.mubr.f32.gmra.mxu0 %v221
      %v410 = vpop.f32.mrf.mxu0
      %v411 = vadd.f32 0.0, %v410
      %v412 = vpop.f32.mrf.mxu0
      %413 = vmatprep.mubr.f32.mxu0 0.0
      %414 = vmatmul.mubr.f32.gmra.mxu0 %v224
      %v415 = vpop.f32.mrf.mxu0
      %v416 = vadd.f32 0.0, %v415
      %v417 = vpop.f32.mrf.mxu0
      %418 = vmatprep.mubr.f32.mxu0 0.0
      %419 = vmatmul.mubr.f32.gmra.mxu0 %v227
      %v420 = vpop.f32.mrf.mxu0
      %v421 = vadd.f32 0.0, %v420
      %v422 = vpop.f32.mrf.mxu0
      %423 = vmatprep.mubr.f32.mxu0 0.0
      %424 = vmatmul.mubr.f32.gmra.mxu0 %v230
      %v425 = vpop.f32.mrf.mxu0
      %v426 = vadd.f32 0.0, %v425
      %v427 = vpop.f32.mrf.mxu0
      %428 = vmatprep.mubr.f32.mxu0 0.0
      %429 = vmatmul.mubr.f32.gmra.mxu0 %v233
      %v430 = vpop.f32.mrf.mxu0
      %v431 = vadd.f32 0.0, %v430
      %v432 = vpop.f32.mrf.mxu0
      %433 = vmatprep.mubr.f32.mxu0 0.0
      %434 = vmatmul.mubr.f32.gmra.mxu0 %v236
      %v435 = vpop.f32.mrf.mxu0
      %v436 = vadd.f32 0.0, %v435
      %v437 = vpop.f32.mrf.mxu0
      %438 = vmatprep.mubr.f32.mxu0 0.0
      %439 = vmatmul.mubr.f32.gmra.mxu0 %v239
      %v440 = vpop.f32.mrf.mxu0
      %v441 = vadd.f32 0.0, %v440
      %v442 = vpop.f32.mrf.mxu0
      %443 = vmatprep.mubr.f32.mxu0 0.0
      %444 = vmatmul.mubr.f32.gmra.mxu0 %v242
      %v445 = vpop.f32.mrf.mxu0
      %v446 = vadd.f32 0.0, %v445
      %v447 = vpop.f32.mrf.mxu0
      %448 = vmatprep.mubr.f32.mxu0 0.0
      %449 = vmatmul.mubr.f32.gmra.mxu0 %v245
      %v450 = vpop.f32.mrf.mxu0
      %v451 = vadd.f32 0.0, %v450
      %v452 = vpop.f32.mrf.mxu0
      %453 = vmatprep.mubr.f32.mxu0 0.0
      %454 = vmatmul.mubr.f32.gmra.mxu0 %v248
      %v455 = vpop.f32.mrf.mxu0
      %v456 = vadd.f32 0.0, %v455
      %v457 = vpop.f32.mrf.mxu0
      %458 = vmatprep.mubr.f32.mxu0 0.0
      %459 = vmatmul.mubr.f32.gmra.mxu0 %v251
      %v460 = vpop.f32.mrf.mxu0
      %v461 = vadd.f32 0.0, %v460
      %v462 = vpop.f32.mrf.mxu0
      %463 = vmatprep.mubr.f32.mxu0 0.0
      %464 = vmatmul.mubr.f32.gmra.mxu0 %v254
      %v465 = vpop.f32.mrf.mxu0
      %v466 = vadd.f32 0.0, %v465
      %v467 = vpop.f32.mrf.mxu0
      %468 = vmatprep.mubr.f32.mxu0 0.0
      %469 = vmatmul.mubr.f32.gmra.mxu0 %v257
      %v470 = vpop.f32.mrf.mxu0
      %v471 = vadd.f32 0.0, %v470
      %v472 = vpop.f32.mrf.mxu0
      %473 = vmatprep.mubr.f32.mxu0 0.0
      %474 = vmatmul.mubr.f32.gmra.mxu0 %v260
      %v475 = vpop.f32.mrf.mxu0
      %v476 = vadd.f32 0.0, %v475
      %v477 = vpop.f32.mrf.mxu0
      %478 = vmatprep.mubr.f32.mxu0 0.0
      %479 = vmatmul.mubr.f32.gmra.mxu0 %v263
      %v480 = vpop.f32.mrf.mxu0
      %v481 = vadd.f32 0.0, %v480
      %v482 = vpop.f32.mrf.mxu0
      %483 = vmatprep.mubr.f32.mxu0 0.0
      %484 = vmatmul.mubr.f32.gmra.mxu0 %v266
      %v485 = vpop.f32.mrf.mxu0
      %v486 = vadd.f32 0.0, %v485
      %v487 = vpop.f32.mrf.mxu0
      %488 = vmatprep.mubr.f32.mxu0 0.0
      %489 = vmatmul.mubr.f32.gmra.mxu0 %v269
      %v490 = vpop.f32.mrf.mxu0
      %v491 = vadd.f32 0.0, %v490
      %v492 = vpop.f32.mrf.mxu0
      %493 = vmatprep.mubr.f32.mxu0 0.0
      %494 = vmatmul.mubr.f32.gmra.mxu0 %v272
      %v495 = vpop.f32.mrf.mxu0
      %v496 = vadd.f32 0.0, %v495
      %v497 = vpop.f32.mrf.mxu0
      %498 = vmatprep.mubr.f32.mxu0 0.0
      %499 = vmatmul.mubr.f32.gmra.mxu0 %v275
      %v500 = vpop.f32.mrf.mxu0
      %v501 = vadd.f32 0.0, %v500
      %v502 = vpop.f32.mrf.mxu0
      %503 = vmatprep.mubr.f32.mxu0 0.0
      %504 = vmatmul.mubr.f32.gmra.mxu0 %v278
      %v505 = vpop.f32.mrf.mxu0
      %v506 = vadd.f32 0.0, %v505
      %v507 = vpop.f32.mrf.mxu0
      %508 = vdwg.mxu0
      %vm509 = vcmask 261120
      %510 = vst.msk [vmem:[%s145] sm:$0xff] %vm509, %v351
      %511 = vst.msk [vmem:[%s145 + $0x8] sm:$0xff] %vm509, %v356
      %512 = vst.msk [vmem:[%s145 + $0x10] sm:$0xff] %vm509, %v361
      %513 = vst.msk [vmem:[%s145 + $0x18] sm:$0xff] %vm509, %v366
      %514 = vst.msk [vmem:[%s145 + $0x20] sm:$0xff] %vm509, %v371
      %515 = vst.msk [vmem:[%s145 + $0x28] sm:$0xff] %vm509, %v376
      %516 = vst.msk [vmem:[%s145 + $0x30] sm:$0xff] %vm509, %v381
      %517 = vst.msk [vmem:[%s145 + $0x38] sm:$0xff] %vm509, %v386
      %518 = vst.msk [vmem:[%s145 + $0x40] sm:$0xff] %vm509, %v391
      %519 = vst.msk [vmem:[%s145 + $0x48] sm:$0xff] %vm509, %v396
      %520 = vst.msk [vmem:[%s145 + $0x50] sm:$0xff] %vm509, %v401
      %521 = vst.msk [vmem:[%s145 + $0x58] sm:$0xff] %vm509, %v406
      %522 = vst.msk [vmem:[%s145 + $0x60] sm:$0xff] %vm509, %v411
      %523 = vst.msk [vmem:[%s145 + $0x68] sm:$0xff] %vm509, %v416
      %524 = vst.msk [vmem:[%s145 + $0x70] sm:$0xff] %vm509, %v421
      %525 = vst.msk [vmem:[%s145 + $0x78] sm:$0xff] %vm509, %v426
      %526 = vst.msk [vmem:[%s145 + $0x80] sm:$0xff] %vm509, %v431
      %527 = vst.msk [vmem:[%s145 + $0x88] sm:$0xff] %vm509, %v436
      %528 = vst.msk [vmem:[%s145 + $0x90] sm:$0xff] %vm509, %v441
      %529 = vst.msk [vmem:[%s145 + $0x98] sm:$0xff] %vm509, %v446
      %530 = vst.msk [vmem:[%s145 + $0xa0] sm:$0xff] %vm509, %v451
      %531 = vst.msk [vmem:[%s145 + $0xa8] sm:$0xff] %vm509, %v456
      %532 = vst.msk [vmem:[%s145 + $0xb0] sm:$0xff] %vm509, %v461
      %533 = vst.msk [vmem:[%s145 + $0xb8] sm:$0xff] %vm509, %v466
      %534 = vst.msk [vmem:[%s145 + $0xc0] sm:$0xff] %vm509, %v471
      %535 = vst.msk [vmem:[%s145 + $0xc8] sm:$0xff] %vm509, %v476
      %536 = vst.msk [vmem:[%s145 + $0xd0] sm:$0xff] %vm509, %v481
      %537 = vst.msk [vmem:[%s145 + $0xd8] sm:$0xff] %vm509, %v486
      %538 = vst.msk [vmem:[%s145 + $0xe0] sm:$0xff] %vm509, %v491
      %539 = vst.msk [vmem:[%s145 + $0xe8] sm:$0xff] %vm509, %v496
      %540 = vst.msk [vmem:[%s145 + $0xf0] sm:$0xff] %vm509, %v501
      %541 = vst.msk [vmem:[%s145 + $0xf8] sm:$0xff] %vm509, %v506
      %s542 = smul.u32 32, %s13
      %p543 = scmp.lt.s32.totalorder %s542, 63
      %s544 = scalar_select %p543, %s542, 63
      %s545 = smul.addr %s544, 8
      %s546 = scalar_lea.vmem %s2, %s545
      // Predicated region
      $region29: #{tpu_custom_call.1} parent=27 // pred_check
        %p547 = pneg %p78
      $region30: #{tpu_custom_call.1} parent=27 // pred_check_branch
        %549 = sbr.rel (%p547) target = $region32
      $region31: #{tpu_custom_call.1} parent=27 // pred_region
        %s550 = smul.u32 32, %s13
      $region32: #{tpu_custom_call.1} parent=27 // pred_fallthru
        _
    $region28: #{tpu_custom_call.1} parent=5 // pred_fallthru
      _
    %p551 = scmp.le.s32.totalorder 2, %s8
    // Predicated region
    $region33: #{tpu_custom_call.1} parent=5 // pred_check
      %p552 = pneg %p551
    $region34: #{tpu_custom_call.1} parent=5 // pred_check_branch
      %554 = sbr.rel (%p552) target = $region36
    $region35: #{tpu_custom_call.1} parent=5 // pred_region
      %s555 = ssub.s32 %s8, 2
      // Predicated region
      $region37: #{tpu_custom_call.1} parent=35 // pred_check
        %p556 = pneg %p84
      $region38: #{tpu_custom_call.1} parent=35 // pred_check_branch
        %558 = sbr.rel (%p556) target = $region40
      $region39: #{tpu_custom_call.1} parent=35 // pred_region
        %s559 = smul.u32 32, %s14
        %p560 = scmp.lt.s32.totalorder %s559, 63
        %s561 = scalar_select %p560, %s559, 63
        %s562 = smul.addr %s561, 8
        %s563 = scalar_lea.vmem %s2, %s562
      $region40: #{tpu_custom_call.1} parent=35 // pred_fallthru
        _
    $region36: #{tpu_custom_call.1} parent=5 // pred_fallthru
      _
  $region6: #{tpu_custom_call.1} parent=0 // loop_footer
    %s12 = sadd.s32 1, %s8
  $region7: #{tpu_custom_call.1} parent=0 // loop_footer_branch
    %7 = sbr.rel target = $region3
  $region8: #{tpu_custom_call.1} parent=0 // loop_exit
    _

</llo_original>
